<compile_context>
chip_gen: v7x
topology: tpu7x:2x2x1
jax: 0.10.0
libtpu: 0.0.40
codegen_flags: <defaults>
</compile_context>

<pallas_src>
import functools

import jax
import jax.numpy as jnp
from jax.experimental import pallas as pl
from jax.experimental.pallas import tpu as pltpu

BN_EPS = 1e-5
LANE = 128


def _round_up(x, m):
    return (x + m - 1) // m * m


# ---------------------------------------------------------------------------
# Fused kernel: entire MLP in one invocation.
# ---------------------------------------------------------------------------
def _fused_mlp_kernel(x_ref, w1_ref, b1_ref, wh_ref, bh_ref, w2_ref, b2_ref,
                      o_ref, *, n_hidden, unroll_hidden):
    """x: (bm, in_pad) bf16; w1: (in_pad, hid_pad) bf16; b1: (1, hid_pad) f32;
    wh: (L, hid_pad, hid_pad) bf16; bh: (L, 1, hid_pad) f32;
    w2: (hid_pad, cls_pad) bf16; b2: (1, cls_pad) f32; o: (bm, cls_pad) f32."""
    # fc1 (+ folded BN) + ReLU: bf16 x bf16 -> f32 on the MXU, f32 epilogue.
    h = jnp.dot(x_ref[...], w1_ref[...], preferred_element_type=jnp.float32)
    h = jnp.maximum(h + b1_ref[...], 0.0)

    def hidden_layer(hh, w_bf16, b_f32):
        y = jnp.dot(hh.astype(jnp.bfloat16), w_bf16,
                    preferred_element_type=jnp.float32)
        return jnp.maximum(y + b_f32, 0.0)

    if n_hidden > 0:
        if unroll_hidden:
            for l in range(n_hidden):
                h = hidden_layer(h, wh_ref[l], bh_ref[l])
        else:
            h = jax.lax.fori_loop(
                0, n_hidden,
                lambda l, hh: hidden_layer(hh, wh_ref[l], bh_ref[l]),
                h)

    # fc2 head: no ReLU, class-width lane-dense store only.
    y = jnp.dot(h.astype(jnp.bfloat16), w2_ref[...],
                preferred_element_type=jnp.float32) + b2_ref[...]
    o_ref[...] = y.astype(o_ref.dtype)


# ---------------------------------------------------------------------------
# Parameter init (matches PyTorch module shapes, eval-mode BN stats).
# ---------------------------------------------------------------------------
def init_params(key, input_size, num_classes, hidden_dim, hidden_layers):
    params = {}
    k = key

    def linear_init(k, fan_in, fan_out):
        k, kw, kb = jax.random.split(k, 3)
        bound = 1.0 / jnp.sqrt(fan_in)
        w = jax.random.uniform(kw, (fan_in, fan_out), jnp.float32, -bound, bound)
        b = jax.random.uniform(kb, (1, fan_out), jnp.float32, -bound, bound)
        return k, w, b

    def bn_init(k, dim):
        k, km, kv = jax.random.split(k, 3)
        gamma = jnp.ones((1, dim), jnp.float32)
        beta = jnp.zeros((1, dim), jnp.float32)
        mean = 0.1 * jax.random.normal(km, (1, dim), jnp.float32)
        var = 1.0 + 0.1 * jax.random.uniform(kv, (1, dim), jnp.float32)
        return k, gamma, beta, mean, var

    k, w1, b1 = linear_init(k, input_size, hidden_dim)
    k, g1, be1, m1, v1 = bn_init(k, hidden_dim)
    params["fc1"] = (w1, b1, g1, be1, m1, v1)

    hidden = []
    for _ in range(hidden_layers):
        k, w, b = linear_init(k, hidden_dim, hidden_dim)
        k, g, be, m, v = bn_init(k, hidden_dim)
        hidden.append((w, b, g, be, m, v))
    params["hidden"] = hidden

    k, w2, b2 = linear_init(k, hidden_dim, num_classes)
    params["fc2"] = (w2, b2)
    return params


# ---------------------------------------------------------------------------
# One-time pack: fold BN into Linear, pad each dim to 128 independently.
# ---------------------------------------------------------------------------
def fold_and_pack_params(params, input_size, hidden_dim, num_classes):
    in_pad = _round_up(input_size, LANE)
    hid_pad = _round_up(hidden_dim, LANE)
    cls_pad = _round_up(num_classes, LANE)

    def fold(w, b, g, beta, mean, var):
        scale = g * jax.lax.rsqrt(var + BN_EPS)          # (1, out)
        return w * scale, (b - mean) * scale + beta

    def pad(w, b, fi_pad, fo_pad):
        fi, fo = w.shape
        return (jnp.pad(w, ((0, fi_pad - fi), (0, fo_pad - fo))),
                jnp.pad(b, ((0, 0), (0, fo_pad - fo))))

    w1, b1, g1, be1, m1, v1 = params["fc1"]
    w1p, b1p = pad(*fold(w1, b1, g1, be1, m1, v1), in_pad, hid_pad)

    n_hidden = len(params["hidden"])
    whs, bhs = [], []
    for (wl, bl, g, be, m, v) in params["hidden"]:
        wp, bp = pad(*fold(wl, bl, g, be, m, v), hid_pad, hid_pad)
        whs.append(wp)
        bhs.append(bp)
    if n_hidden == 0:  # dummy (unused) slot so the stacked ref is well-formed
        whs = [jnp.zeros((hid_pad, hid_pad), jnp.float32)]
        bhs = [jnp.zeros((1, hid_pad), jnp.float32)]
    wh = jnp.stack(whs)
    bh = jnp.stack(bhs)

    w2, b2 = params["fc2"]
    w2p, b2p = pad(w2, b2, hid_pad, cls_pad)

    packed = dict(
        w1=w1p.astype(jnp.bfloat16), b1=b1p.astype(jnp.float32),
        wh=wh.astype(jnp.bfloat16), bh=bh.astype(jnp.float32),
        w2=w2p.astype(jnp.bfloat16), b2=b2p.astype(jnp.float32))
    return packed, n_hidden


# ---------------------------------------------------------------------------
# Batch-tile choice and VMEM budget.
# ---------------------------------------------------------------------------
def _choose_batch_tile(batch):
    """>=128-row tiles (MXU-filling), pad waste capped to <128 rows, and >=2
    grid steps whenever b_pad >= 256 so both v7x TensorCores get work."""
    b_pad = _round_up(max(batch, 1), 128)
    if b_pad == 128:
        return b_pad, 128
    for bm in (512, 256, 128):
        if b_pad % bm == 0 and b_pad // bm >= 2:
            return b_pad, bm
    return b_pad, 128


def _vmem_limit_bytes(bm, in_pad, hid_pad, cls_pad, n_hidden):
    n_h = max(n_hidden, 1)
    weights = 2 * (in_pad * hid_pad + n_h * hid_pad * hid_pad
                   + hid_pad * cls_pad)                      # bf16, resident once
    biases = 4 * 8 * ((n_h + 1) * hid_pad + cls_pad)         # f32, sublane-padded
    x_tiles = 2 * bm * in_pad * 2                            # bf16, double-buffered
    o_tiles = 2 * bm * cls_pad * 4                           # f32, double-buffered
    live = 4 * bm * max(in_pad, hid_pad, cls_pad) * 4        # f32 activations in flight
    need = weights + biases + x_tiles + o_tiles + live
    return int(min(128 << 20, max(32 << 20, int(need * 1.5) + (4 << 20))))


# ---------------------------------------------------------------------------
# Forward wrapper: one pallas_call, batch tiled along a "parallel" grid axis.
# ---------------------------------------------------------------------------
@functools.partial(jax.jit, static_argnames=("n_hidden", "num_classes"))
def asl_network_forward(x, w1, b1, wh, bh, w2, b2, *, n_hidden, num_classes):
    B, F = x.shape
    in_pad, hid_pad = w1.shape
    cls_pad = w2.shape[1]

    b_pad, bm = _choose_batch_tile(B)
    # bf16 cast BEFORE padding: halves pad traffic and the kernel's input DMA.
    x_pad = jnp.pad(x.astype(jnp.bfloat16), ((0, b_pad - B), (0, in_pad - F)))

    kernel = functools.partial(_fused_mlp_kernel, n_hidden=n_hidden,
                               unroll_hidden=n_hidden <= 8)
    # Whole-array VMEM-resident params: single copy, not part of the batch
    # pipeline (so never double-buffered).
    resident = pl.BlockSpec(memory_space=pltpu.MemorySpace.VMEM)

    out = pl.pallas_call(
        kernel,
        out_shape=jax.ShapeDtypeStruct((b_pad, cls_pad), jnp.float32),
        grid=(b_pad // bm,),
        in_specs=[
            pl.BlockSpec((bm, in_pad), lambda i: (i, 0)),   # batch tile (pipelined)
            resident, resident,                             # w1, b1
            resident, resident,                             # wh, bh
            resident, resident,                             # w2, b2
        ],
        out_specs=pl.BlockSpec((bm, cls_pad), lambda i: (i, 0)),
        compiler_params=pltpu.CompilerParams(
            dimension_semantics=("parallel",),
            vmem_limit_bytes=_vmem_limit_bytes(
                bm, in_pad, hid_pad, cls_pad, n_hidden)),
    )(x_pad, w1, b1, wh, bh, w2, b2)
    return out[:B, :num_classes]


# ---------------------------------------------------------------------------
# References.
# ---------------------------------------------------------------------------
def reference_forward_f32(x, params):
    """Pure-f32 JAX equivalent of the PyTorch module in eval mode."""
    def lbr(h, w, b, g, be, m, v):
        y = h @ w + b
        y = (y - m) * (g / jnp.sqrt(v + BN_EPS)) + be
        return jnp.maximum(y, 0.0)

    w1, b1, g1, be1, m1, v1 = params["fc1"]
    h = lbr(x, w1, b1, g1, be1, m1, v1)
    for (w, b, g, be, m, v) in params["hidden"]:
        h = lbr(h, w, b, g, be, m, v)
    w2, b2 = params["fc2"]
    return h @ w2 + b2


def reference_forward_bf16(x, packed, n_hidden, num_classes):
    """BN-folded, bf16-matmul reference matching the kernel arithmetic."""
    in_pad = packed["w1"].shape[0]
    h = jnp.pad(x.astype(jnp.bfloat16), ((0, 0), (0, in_pad - x.shape[1])))
    h = jnp.maximum(jnp.dot(h, packed["w1"],
                            preferred_element_type=jnp.float32)
                    + packed["b1"], 0.0)
    for l in range(n_hidden):
        y = jnp.dot(h.astype(jnp.bfloat16), packed["wh"][l],
                    preferred_element_type=jnp.float32) + packed["bh"][l]
        h = jnp.maximum(y, 0.0)
    y = jnp.dot(h.astype(jnp.bfloat16), packed["w2"],
                preferred_element_type=jnp.float32) + packed["b2"]
    return y[:, :num_classes]


if __name__ == "__main__":
    batch = 16
    input_size = 64
    hidden_dim = 32
    hidden_layers = 2
    num_classes = 16

    key = jax.random.PRNGKey(0)
    kx, kp = jax.random.split(key)
    x = jax.random.normal(kx, (batch, input_size), jnp.float32)
    params = init_params(kp, input_size, num_classes, hidden_dim, hidden_layers)

    # One-time pack (BN folding + per-dim padding + stacking), off the hot path.
    packed, n_hidden = fold_and_pack_params(
        params, input_size, hidden_dim, num_classes)

    out = asl_network_forward(
        x, packed["w1"], packed["b1"], packed["wh"], packed["bh"],
        packed["w2"], packed["b2"], n_hidden=n_hidden, num_classes=num_classes)
    out = jax.block_until_ready(out)
    assert out.shape == (batch, num_classes)

    # Tight check vs. a reference using the same bf16/f32-accum arithmetic.
    ref_bf16 = reference_forward_bf16(x, packed, n_hidden, num_classes)
    assert jnp.allclose(out, ref_bf16, atol=1e-4, rtol=1e-4), (
        float(jnp.max(jnp.abs(out - ref_bf16))))

    # Loose check vs. the pure-f32 module semantics (bf16 MXU operands
    # introduce ~1e-2-level relative differences).
    ref_f32 = reference_forward_f32(x, params)
    assert jnp.allclose(out, ref_f32, atol=1e-1, rtol=1e-1), (
        float(jnp.max(jnp.abs(out - ref_f32))))

    print("KERNEL_OK")
</pallas_src>

<mosaic_0001>
module attributes {stable_mosaic.version = 11 : i64} {
  func.func @_fused_mlp_kernel(%arg0: i32, %arg1: memref<128x128xbf16, #tpu.memory_space<vmem>>, %arg2: memref<128x128xbf16, #tpu.memory_space<vmem>>, %arg3: memref<1x128xf32, #tpu.memory_space<vmem>>, %arg4: memref<2x128x128xbf16, #tpu.memory_space<vmem>>, %arg5: memref<2x1x128xf32, #tpu.memory_space<vmem>>, %arg6: memref<128x128xbf16, #tpu.memory_space<vmem>>, %arg7: memref<1x128xf32, #tpu.memory_space<vmem>>, %arg8: memref<128x128xf32, #tpu.memory_space<vmem>>) attributes {dimension_semantics = [#tpu.dimension_semantics<parallel>], iteration_bounds = array<i64: 1>, scalar_prefetch = 0 : i64, scratch_operands = 0 : i64, tpu.core_type = #tpu.core_type<tc>, window_params = [{transform_indices = @transform_0, window_bounds = array<i64: 128, 128>}, {pipeline_mode = #tpu.pipeline_mode<synchronous>, transform_indices = @transform_1, window_bounds = array<i64: 128, 128>}, {pipeline_mode = #tpu.pipeline_mode<synchronous>, transform_indices = @transform_2, window_bounds = array<i64: 1, 128>}, {pipeline_mode = #tpu.pipeline_mode<synchronous>, transform_indices = @transform_3, window_bounds = array<i64: 2, 128, 128>}, {pipeline_mode = #tpu.pipeline_mode<synchronous>, transform_indices = @transform_4, window_bounds = array<i64: 2, 1, 128>}, {pipeline_mode = #tpu.pipeline_mode<synchronous>, transform_indices = @transform_5, window_bounds = array<i64: 128, 128>}, {pipeline_mode = #tpu.pipeline_mode<synchronous>, transform_indices = @transform_6, window_bounds = array<i64: 1, 128>}, {transform_indices = @transform_7, window_bounds = array<i64: 128, 128>}]} {
    %c0 = arith.constant 0 : index
    %c0_0 = arith.constant 0 : index
    %0 = vector.load %arg1[%c0, %c0_0] : memref<128x128xbf16, #tpu.memory_space<vmem>>, vector<128x128xbf16>
    %c0_1 = arith.constant 0 : index
    %c0_2 = arith.constant 0 : index
    %1 = vector.load %arg2[%c0_1, %c0_2] : memref<128x128xbf16, #tpu.memory_space<vmem>>, vector<128x128xbf16>
    %cst = arith.constant dense<0.000000e+00> : vector<128x128xf32>
    %2 = tpu.matmul %0, %1, %cst {dimension_numbers = #tpu.dot_dimension_numbers<[1], [0], [0], [1], [0, 0, 1, 1], [], []>} : vector<128x128xbf16>, vector<128x128xbf16>, vector<128x128xf32> -> vector<128x128xf32>
    %c0_3 = arith.constant 0 : index
    %c0_4 = arith.constant 0 : index
    %3 = vector.load %arg3[%c0_3, %c0_4] : memref<1x128xf32, #tpu.memory_space<vmem>>, vector<1x128xf32>
    %4 = vector.broadcast %3 : vector<1x128xf32> to vector<128x128xf32>
    %5 = arith.addf %2, %4 : vector<128x128xf32>
    %cst_5 = arith.constant 0.000000e+00 : f32
    %6 = vector.broadcast %cst_5 : f32 to vector<128x128xf32>
    %7 = arith.maximumf %5, %6 : vector<128x128xf32>
    %c0_6 = arith.constant 0 : index
    %c0_7 = arith.constant 0 : index
    %c0_8 = arith.constant 0 : index
    %8 = vector.load %arg4[%c0_6, %c0_7, %c0_8] : memref<2x128x128xbf16, #tpu.memory_space<vmem>>, vector<1x128x128xbf16>
    %9 = vector.shape_cast %8 : vector<1x128x128xbf16> to vector<128x128xbf16>
    %c0_9 = arith.constant 0 : index
    %c0_10 = arith.constant 0 : index
    %c0_11 = arith.constant 0 : index
    %10 = vector.load %arg5[%c0_9, %c0_10, %c0_11] : memref<2x1x128xf32, #tpu.memory_space<vmem>>, vector<1x1x128xf32>
    %11 = vector.shape_cast %10 : vector<1x1x128xf32> to vector<1x128xf32>
    %12 = arith.truncf %7 : vector<128x128xf32> to vector<128x128xbf16>
    %cst_12 = arith.constant dense<0.000000e+00> : vector<128x128xf32>
    %13 = tpu.matmul %12, %9, %cst_12 {dimension_numbers = #tpu.dot_dimension_numbers<[1], [0], [0], [1], [0, 0, 1, 1], [], []>} : vector<128x128xbf16>, vector<128x128xbf16>, vector<128x128xf32> -> vector<128x128xf32>
    %14 = vector.broadcast %11 : vector<1x128xf32> to vector<128x128xf32>
    %15 = arith.addf %13, %14 : vector<128x128xf32>
    %cst_13 = arith.constant 0.000000e+00 : f32
    %16 = vector.broadcast %cst_13 : f32 to vector<128x128xf32>
    %17 = arith.maximumf %15, %16 : vector<128x128xf32>
    %c1 = arith.constant 1 : index
    %c0_14 = arith.constant 0 : index
    %c0_15 = arith.constant 0 : index
    %18 = vector.load %arg4[%c1, %c0_14, %c0_15] : memref<2x128x128xbf16, #tpu.memory_space<vmem>>, vector<1x128x128xbf16>
    %19 = vector.shape_cast %18 : vector<1x128x128xbf16> to vector<128x128xbf16>
    %c1_16 = arith.constant 1 : index
    %c0_17 = arith.constant 0 : index
    %c0_18 = arith.constant 0 : index
    %20 = vector.load %arg5[%c1_16, %c0_17, %c0_18] : memref<2x1x128xf32, #tpu.memory_space<vmem>>, vector<1x1x128xf32>
    %21 = vector.shape_cast %20 : vector<1x1x128xf32> to vector<1x128xf32>
    %22 = arith.truncf %17 : vector<128x128xf32> to vector<128x128xbf16>
    %cst_19 = arith.constant dense<0.000000e+00> : vector<128x128xf32>
    %23 = tpu.matmul %22, %19, %cst_19 {dimension_numbers = #tpu.dot_dimension_numbers<[1], [0], [0], [1], [0, 0, 1, 1], [], []>} : vector<128x128xbf16>, vector<128x128xbf16>, vector<128x128xf32> -> vector<128x128xf32>
    %24 = vector.broadcast %21 : vector<1x128xf32> to vector<128x128xf32>
    %25 = arith.addf %23, %24 : vector<128x128xf32>
    %cst_20 = arith.constant 0.000000e+00 : f32
    %26 = vector.broadcast %cst_20 : f32 to vector<128x128xf32>
    %27 = arith.maximumf %25, %26 : vector<128x128xf32>
    %28 = arith.truncf %27 : vector<128x128xf32> to vector<128x128xbf16>
    %c0_21 = arith.constant 0 : index
    %c0_22 = arith.constant 0 : index
    %29 = vector.load %arg6[%c0_21, %c0_22] : memref<128x128xbf16, #tpu.memory_space<vmem>>, vector<128x128xbf16>
    %cst_23 = arith.constant dense<0.000000e+00> : vector<128x128xf32>
    %30 = tpu.matmul %28, %29, %cst_23 {dimension_numbers = #tpu.dot_dimension_numbers<[1], [0], [0], [1], [0, 0, 1, 1], [], []>} : vector<128x128xbf16>, vector<128x128xbf16>, vector<128x128xf32> -> vector<128x128xf32>
    %c0_24 = arith.constant 0 : index
    %c0_25 = arith.constant 0 : index
    %31 = vector.load %arg7[%c0_24, %c0_25] : memref<1x128xf32, #tpu.memory_space<vmem>>, vector<1x128xf32>
    %32 = vector.broadcast %31 : vector<1x128xf32> to vector<128x128xf32>
    %33 = arith.addf %30, %32 : vector<128x128xf32>
    %c0_26 = arith.constant 0 : index
    %c0_27 = arith.constant 0 : index
    %34 = vector.load %arg8[%c0_26, %c0_27] : memref<128x128xf32, #tpu.memory_space<vmem>>, vector<128x128xf32>
    tpu.vector_store %arg8[%c0_26, %c0_27], %33 {strides = array<i32>} : memref<128x128xf32, #tpu.memory_space<vmem>>, vector<128x128xf32>,
    return
  }
  func.func @transform_0(%arg0: i32) -> (i32, i32) {
    %c0_i32 = arith.constant 0 : i32
    %c0_i32_0 = arith.constant 0 : i32
    return %arg0, %c0_i32 : i32, i32
  }
  func.func @transform_1(%arg0: i32) -> (i32, i32) {
    %c0_i32 = arith.constant 0 : i32
    %c0_i32_0 = arith.constant 0 : i32
    %c0_i32_1 = arith.constant 0 : i32
    return %c0_i32, %c0_i32_0 : i32, i32
  }
  func.func @transform_2(%arg0: i32) -> (i32, i32) {
    %c0_i32 = arith.constant 0 : i32
    %c0_i32_0 = arith.constant 0 : i32
    %c0_i32_1 = arith.constant 0 : i32
    return %c0_i32, %c0_i32_0 : i32, i32
  }
  func.func @transform_3(%arg0: i32) -> (i32, i32, i32) {
    %c0_i32 = arith.constant 0 : i32
    %c0_i32_0 = arith.constant 0 : i32
    %c0_i32_1 = arith.constant 0 : i32
    %c0_i32_2 = arith.constant 0 : i32
    return %c0_i32, %c0_i32_0, %c0_i32_1 : i32, i32, i32
  }
  func.func @transform_4(%arg0: i32) -> (i32, i32, i32) {
    %c0_i32 = arith.constant 0 : i32
    %c0_i32_0 = arith.constant 0 : i32
    %c0_i32_1 = arith.constant 0 : i32
    %c0_i32_2 = arith.constant 0 : i32
    return %c0_i32, %c0_i32_0, %c0_i32_1 : i32, i32, i32
  }
  func.func @transform_5(%arg0: i32) -> (i32, i32) {
    %c0_i32 = arith.constant 0 : i32
    %c0_i32_0 = arith.constant 0 : i32
    %c0_i32_1 = arith.constant 0 : i32
    return %c0_i32, %c0_i32_0 : i32, i32
  }
  func.func @transform_6(%arg0: i32) -> (i32, i32) {
    %c0_i32 = arith.constant 0 : i32
    %c0_i32_0 = arith.constant 0 : i32
    %c0_i32_1 = arith.constant 0 : i32
    return %c0_i32, %c0_i32_0 : i32, i32
  }
  func.func @transform_7(%arg0: i32) -> (i32, i32) {
    %c0_i32 = arith.constant 0 : i32
    %c0_i32_0 = arith.constant 0 : i32
    return %arg0, %c0_i32 : i32, i32
  }
}

</mosaic_0001>

<llo_original>
// kernel: asl_network_forward.1
$region0: #{asl_network_forward.1}
  #allocation0 [shape = 'u32[]', space=smem, size = 0x4, offset = 0x4, fixed_abs, tag = 'smem constant byte address 0x4 - core index']
  #allocation1 [shape = 'u32[144,128]{1,0:T(1,128)}', space=vmem, size = 0x12000, scoped, tag = 'internal scratch']
  %s0 = inlined_call_operand.vmem [shape: bf16[128,128], index: 0, kind: input, shape index: {}]
  %s1 = inlined_call_operand.vmem [shape: bf16[128,128], index: 1, kind: input, shape index: {}]
  %s2 = inlined_call_operand.vmem [shape: f32[1,128], index: 2, kind: input, shape index: {}]
  %s3 = inlined_call_operand.hbm [shape: bf16[2,128,128], index: 3, kind: input, shape index: {}]
  %s4 = inlined_call_operand.vmem [shape: f32[2,1,128], index: 4, kind: input, shape index: {}]
  %s5 = inlined_call_operand.hbm [shape: bf16[128,128], index: 5, kind: input, shape index: {}]
  %s6 = inlined_call_operand.vmem [shape: f32[1,128], index: 6, kind: input, shape index: {}]
  %s7 = inlined_call_operand.vmem [shape: f32[128,128], index: 7, kind: output, shape index: {}]
  %s8 = sld [smem:[#allocation0]]
  $region46: #{asl_network_forward.1} parent=0
    _
  %s10 = ssub.s32 1, %s8
  %s11 = scalar_select 0, %s10, %s8
  $region1: #{asl_network_forward.1} parent=0
    #allocation2 [shape = 'u8[65536]{0}', space=vmem, size = 0x10000, scoped, tag = 'input window, operand 3, single buffered']
    #allocation3 [shape = 's32[1]{0}', space=sflag, size = 0x4, scoped, tag = 'scoped memory for asl_network_forward.1']
    #allocation4 [shape = 'u8[32768]{0}', space=vmem, size = 0x8000, scoped, tag = 'input window, operand 5, single buffered']
    #allocation5 [shape = 's32[1]{0}', space=sflag, size = 0x4, scoped, tag = 'scoped memory for asl_network_forward.1']
    %12 = vsyncpa [#allocation3], 0
    %13 = vsyncpa [#allocation5], 0
    // Predicated region
    $region2: #{asl_network_forward.1} parent=1 // pred_check
      _
    $region3: #{asl_network_forward.1} parent=1 // pred_check_branch
      %15 = sbr.rel (0) target = $region5
    $region4: #{asl_network_forward.1} parent=1 // pred_region
      _
    $region5: #{asl_network_forward.1} parent=1 // pred_fallthru
      _
    // Predicated region
    $region6: #{asl_network_forward.1} parent=1 // pred_check
      _
    $region7: #{asl_network_forward.1} parent=1 // pred_check_branch
      %17 = sbr.rel (0) target = $region9
    $region8: #{asl_network_forward.1} parent=1 // pred_region
      _
    $region9: #{asl_network_forward.1} parent=1 // pred_fallthru
      _
    // Predicated region
    $region10: #{asl_network_forward.1} parent=1 // pred_check
      _
    $region11: #{asl_network_forward.1} parent=1 // pred_check_branch
      %19 = sbr.rel (0) target = $region13
    $region12: #{asl_network_forward.1} parent=1 // pred_region
      _
    $region13: #{asl_network_forward.1} parent=1 // pred_fallthru
      _
    // Predicated region
    $region14: #{asl_network_forward.1} parent=1 // pred_check
      _
    $region15: #{asl_network_forward.1} parent=1 // pred_check_branch
      %21 = sbr.rel (0) target = $region17
    $region16: #{asl_network_forward.1} parent=1 // pred_region
      %s23 = ssub.s32 2048, 2048
      %24 = vsyncadd [#allocation3], %s23
      %s25 = sshll.u32 [#allocation2], 4
      %s26 = int_to_ptr.vmem [resolvable:$true] %s25
      %31 = dma.hbm_to_vmem [thread:$0]  %s3, 2048, %s26, [#allocation3], 64, 64, 4
    $region17: #{asl_network_forward.1} parent=1 // pred_fallthru
      _
    // Predicated region
    $region18: #{asl_network_forward.1} parent=1 // pred_check
      _
    $region19: #{asl_network_forward.1} parent=1 // pred_check_branch
      %33 = sbr.rel (0) target = $region21
    $region20: #{asl_network_forward.1} parent=1 // pred_region
      _
    $region21: #{asl_network_forward.1} parent=1 // pred_fallthru
      _
    // Predicated region
    $region22: #{asl_network_forward.1} parent=1 // pred_check
      _
    $region23: #{asl_network_forward.1} parent=1 // pred_check_branch
      %35 = sbr.rel (0) target = $region25
    $region24: #{asl_network_forward.1} parent=1 // pred_region
      %s37 = ssub.s32 1024, 1024
      %38 = vsyncadd [#allocation5], %s37
      %s39 = sshll.u32 [#allocation4], 4
      %s40 = int_to_ptr.vmem [resolvable:$true] %s39
      %45 = dma.hbm_to_vmem [thread:$0]  %s5, 1024, %s40, [#allocation5], 64, 64, 4
    $region25: #{asl_network_forward.1} parent=1 // pred_fallthru
      _
    // Predicated region
    $region26: #{asl_network_forward.1} parent=1 // pred_check
      _
    $region27: #{asl_network_forward.1} parent=1 // pred_check_branch
      %47 = sbr.rel (0) target = $region29
    $region28: #{asl_network_forward.1} parent=1 // pred_region
      _
    $region29: #{asl_network_forward.1} parent=1 // pred_fallthru
      _
    // Predicated region
    $region30: #{asl_network_forward.1} parent=1 // pred_check
      _
    $region31: #{asl_network_forward.1} parent=1 // pred_check_branch
      %49 = sbr.rel (0) target = $region33
    $region32: #{asl_network_forward.1} parent=1 // pred_region
      %50 = dma.done [#allocation3], 2048
    $region33: #{asl_network_forward.1} parent=1 // pred_fallthru
      _
    // Predicated region
    $region34: #{asl_network_forward.1} parent=1 // pred_check
      _
    $region35: #{asl_network_forward.1} parent=1 // pred_check_branch
      %52 = sbr.rel (0) target = $region37
    $region36: #{asl_network_forward.1} parent=1 // pred_region
      %53 = dma.done [#allocation5], 1024
    $region37: #{asl_network_forward.1} parent=1 // pred_fallthru
      _
    %v55 = vld [vmem:[%s0] sm:$0xf]
    %v56 = vld [vmem:[%s0 + $0x4] sm:$0xf]
    %v57 = vld [vmem:[%s0 + $0x8] sm:$0xf]
    %v58 = vld [vmem:[%s0 + $0xc] sm:$0xf]
    %v59 = vld [vmem:[%s0 + $0x10] sm:$0xf]
    %v60 = vld [vmem:[%s0 + $0x14] sm:$0xf]
    %v61 = vld [vmem:[%s0 + $0x18] sm:$0xf]
    %v62 = vld [vmem:[%s0 + $0x1c] sm:$0xf]
    %v63 = vld [vmem:[%s0 + $0x20] sm:$0xf]
    %v64 = vld [vmem:[%s0 + $0x24] sm:$0xf]
    %v65 = vld [vmem:[%s0 + $0x28] sm:$0xf]
    %v66 = vld [vmem:[%s0 + $0x2c] sm:$0xf]
    %v67 = vld [vmem:[%s0 + $0x30] sm:$0xf]
    %v68 = vld [vmem:[%s0 + $0x34] sm:$0xf]
    %v69 = vld [vmem:[%s0 + $0x38] sm:$0xf]
    %v70 = vld [vmem:[%s0 + $0x3c] sm:$0xf]
    %v71 = vld [vmem:[%s1] sm:$0xf]
    %v72 = vld [vmem:[%s1 + $0x4] sm:$0xf]
    %v73 = vld [vmem:[%s1 + $0x8] sm:$0xf]
    %v74 = vld [vmem:[%s1 + $0xc] sm:$0xf]
    %v75 = vld [vmem:[%s1 + $0x10] sm:$0xf]
    %v76 = vld [vmem:[%s1 + $0x14] sm:$0xf]
    %v77 = vld [vmem:[%s1 + $0x18] sm:$0xf]
    %v78 = vld [vmem:[%s1 + $0x1c] sm:$0xf]
    %v79 = vld [vmem:[%s1 + $0x20] sm:$0xf]
    %v80 = vld [vmem:[%s1 + $0x24] sm:$0xf]
    %v81 = vld [vmem:[%s1 + $0x28] sm:$0xf]
    %v82 = vld [vmem:[%s1 + $0x2c] sm:$0xf]
    %v83 = vld [vmem:[%s1 + $0x30] sm:$0xf]
    %v84 = vld [vmem:[%s1 + $0x34] sm:$0xf]
    %v85 = vld [vmem:[%s1 + $0x38] sm:$0xf]
    %v86 = vld [vmem:[%s1 + $0x3c] sm:$0xf]
    %v87 = vld [vmem:[%s2] sm:$0x1]
    %v89 = vlaneseq
    %v90 = vshrl.u32 %v89, 7
    %v91 = vsub.s32 0, %v90
    %v92 = vrot.slane %v87, %v91
    %v110 = vunpack.c.l.b16 %v55
    %v111 = vunpack.c.l.b16 %v56
    %v112 = vunpack.c.l.b16 %v57
    %v113 = vunpack.c.l.b16 %v58
    %v114 = vunpack.c.l.b16 %v59
    %v115 = vunpack.c.l.b16 %v60
    %v116 = vunpack.c.l.b16 %v61
    %v117 = vunpack.c.l.b16 %v62
    %v118 = vunpack.c.l.b16 %v63
    %v119 = vunpack.c.l.b16 %v64
    %v120 = vunpack.c.l.b16 %v65
    %v121 = vunpack.c.l.b16 %v66
    %v122 = vunpack.c.l.b16 %v67
    %v123 = vunpack.c.l.b16 %v68
    %v124 = vunpack.c.l.b16 %v69
    %v125 = vunpack.c.l.b16 %v70
    %v126 = vpack.c.b16 %v111, %v110
    %v127 = vpack.c.b16 %v113, %v112
    %v128 = vpack.c.b16 %v115, %v114
    %v129 = vpack.c.b16 %v117, %v116
    %v130 = vpack.c.b16 %v119, %v118
    %v131 = vpack.c.b16 %v121, %v120
    %v132 = vpack.c.b16 %v123, %v122
    %v133 = vpack.c.b16 %v125, %v124
    %v158 = vunpack.c.l.b16 %v71
    %v159 = vunpack.c.l.b16 %v72
    %v160 = vunpack.c.l.b16 %v73
    %v161 = vunpack.c.l.b16 %v74
    %v162 = vunpack.c.l.b16 %v75
    %v163 = vunpack.c.l.b16 %v76
    %v164 = vunpack.c.l.b16 %v77
    %v165 = vunpack.c.l.b16 %v78
    %v166 = vunpack.c.l.b16 %v79
    %v167 = vunpack.c.l.b16 %v80
    %v168 = vunpack.c.l.b16 %v81
    %v169 = vunpack.c.l.b16 %v82
    %v170 = vunpack.c.l.b16 %v83
    %v171 = vunpack.c.l.b16 %v84
    %v172 = vunpack.c.l.b16 %v85
    %v173 = vunpack.c.l.b16 %v86
    %v174 = vpack.c.b16 %v159, %v158
    %v175 = vpack.c.b16 %v161, %v160
    %v176 = vpack.c.b16 %v163, %v162
    %v177 = vpack.c.b16 %v165, %v164
    %v178 = vpack.c.b16 %v167, %v166
    %v179 = vpack.c.b16 %v169, %v168
    %v180 = vpack.c.b16 %v171, %v170
    %v181 = vpack.c.b16 %v173, %v172
    %190 = vmatprep.subr.bf16.mxu0 0
    %191 = vmatpush1.bf16.msra.mxu0 %v174
    %192 = vmatprep.subr.bf16.mxu0 0
    %193 = vmatpush1.bf16.msra.mxu0 %v175
    %194 = vmatprep.subr.bf16.mxu0 0
    %195 = vmatpush1.bf16.msra.mxu0 %v176
    %196 = vmatprep.subr.bf16.mxu0 0
    %197 = vmatpush1.bf16.msra.mxu0 %v177
    %198 = vmatprep.subr.bf16.mxu0 0
    %199 = vmatpush1.bf16.msra.mxu0 %v178
    %200 = vmatprep.subr.bf16.mxu0 0
    %201 = vmatpush1.bf16.msra.mxu0 %v179
    %202 = vmatprep.subr.bf16.mxu0 0
    %203 = vmatpush1.bf16.msra.mxu0 %v180
    %204 = vmatprep.subr.bf16.mxu0 0
    %205 = vmatpush1.bf16.msra.mxu0 %v181
    %206 = vmatprep.subr.bf16.mxu0 0
    %207 = vmatpush1.bf16.msra.mxu0 0
    %208 = vmatprep.subr.bf16.mxu0 0
    %209 = vmatpush1.bf16.msra.mxu0 0
    %210 = vmatprep.subr.bf16.mxu0 0
    %211 = vmatpush1.bf16.msra.mxu0 0
    %212 = vmatprep.subr.bf16.mxu0 0
    %213 = vmatpush1.bf16.msra.mxu0 0
    %214 = vmatprep.subr.bf16.mxu0 0
    %215 = vmatpush1.bf16.msra.mxu0 0
    %216 = vmatprep.subr.bf16.mxu0 0
    %217 = vmatpush1.bf16.msra.mxu0 0
    %218 = vmatprep.subr.bf16.mxu0 0
    %219 = vmatpush1.bf16.msra.mxu0 0
    %220 = vmatprep.subr.bf16.mxu0 0
    %221 = vmatpush1.bf16.msra.mxu0 0
    %222 = vmatprep.mubr.bf16.mxu0 0
    %223 = vmatmul.mubr.bf16.gmra.mrb[0].mxu0 %v126
    %v224 = vpop.f32.mrb[0].mxu0
    %v225 = vadd.f32 %v92, %v224
    %v226 = vpop.f32.mrb[0].mxu0
    %v227 = vpop.f32.mrb[0].mxu0
    %v228 = vadd.f32 %v92, %v227
    %v229 = vpop.f32.mrb[0].mxu0
    %230 = vmatprep.mubr.bf16.mxu0 0
    %231 = vmatmul.mubr.bf16.gmra.mrb[0].mxu0 %v127
    %v232 = vpop.f32.mrb[0].mxu0
    %v233 = vadd.f32 %v92, %v232
    %v234 = vpop.f32.mrb[0].mxu0
    %v235 = vpop.f32.mrb[0].mxu0
    %v236 = vadd.f32 %v92, %v235
    %v237 = vpop.f32.mrb[0].mxu0
    %238 = vmatprep.mubr.bf16.mxu0 0
    %239 = vmatmul.mubr.bf16.gmra.mrb[0].mxu0 %v128
    %v240 = vpop.f32.mrb[0].mxu0
    %v241 = vadd.f32 %v92, %v240
    %v242 = vpop.f32.mrb[0].mxu0
    %v243 = vpop.f32.mrb[0].mxu0
    %v244 = vadd.f32 %v92, %v243
    %v245 = vpop.f32.mrb[0].mxu0
    %246 = vmatprep.mubr.bf16.mxu0 0
    %247 = vmatmul.mubr.bf16.gmra.mrb[0].mxu0 %v129
    %v248 = vpop.f32.mrb[0].mxu0
    %v249 = vadd.f32 %v92, %v248
    %v250 = vpop.f32.mrb[0].mxu0
    %v251 = vpop.f32.mrb[0].mxu0
    %v252 = vadd.f32 %v92, %v251
    %v253 = vpop.f32.mrb[0].mxu0
    %254 = vmatprep.mubr.bf16.mxu0 0
    %255 = vmatmul.mubr.bf16.gmra.mrb[0].mxu0 %v130
    %v256 = vpop.f32.mrb[0].mxu0
    %v257 = vadd.f32 %v92, %v256
    %v258 = vpop.f32.mrb[0].mxu0
    %v259 = vpop.f32.mrb[0].mxu0
    %v260 = vadd.f32 %v92, %v259
    %v261 = vpop.f32.mrb[0].mxu0
    %262 = vmatprep.mubr.bf16.mxu0 0
    %263 = vmatmul.mubr.bf16.gmra.mrb[0].mxu0 %v131
    %v264 = vpop.f32.mrb[0].mxu0
    %v265 = vadd.f32 %v92, %v264
    %v266 = vpop.f32.mrb[0].mxu0
    %v267 = vpop.f32.mrb[0].mxu0
    %v268 = vadd.f32 %v92, %v267
    %v269 = vpop.f32.mrb[0].mxu0
    %270 = vmatprep.mubr.bf16.mxu0 0
    %271 = vmatmul.mubr.bf16.gmra.mrb[0].mxu0 %v132
    %v272 = vpop.f32.mrb[0].mxu0
    %v273 = vadd.f32 %v92, %v272
    %v274 = vpop.f32.mrb[0].mxu0
    %v275 = vpop.f32.mrb[0].mxu0
    %v276 = vadd.f32 %v92, %v275
    %v277 = vpop.f32.mrb[0].mxu0
    %278 = vmatprep.mubr.bf16.mxu0 0
    %279 = vmatmul.mubr.bf16.gmra.mrb[0].mxu0 %v133
    %v280 = vpop.f32.mrb[0].mxu0
    %v281 = vadd.f32 %v92, %v280
    %v282 = vpop.f32.mrb[0].mxu0
    %v283 = vpop.f32.mrb[0].mxu0
    %v284 = vadd.f32 %v92, %v283
    %v285 = vpop.f32.mrb[0].mxu0
    %286 = vdwg.mxu0
    %v287 = vmax.f32 %v225, 0.0
    %v288 = vmax.f32 %v228, 0.0
    %v289 = vmax.f32 %v233, 0.0
    %v290 = vmax.f32 %v236, 0.0
    %v291 = vmax.f32 %v241, 0.0
    %v292 = vmax.f32 %v244, 0.0
    %v293 = vmax.f32 %v249, 0.0
    %v294 = vmax.f32 %v252, 0.0
    %v295 = vmax.f32 %v257, 0.0
    %v296 = vmax.f32 %v260, 0.0
    %v297 = vmax.f32 %v265, 0.0
    %v298 = vmax.f32 %v268, 0.0
    %v299 = vmax.f32 %v273, 0.0
    %v300 = vmax.f32 %v276, 0.0
    %v301 = vmax.f32 %v281, 0.0
    %v302 = vmax.f32 %v284, 0.0
    %v303 = vld [vmem:[#allocation2] sm:$0xf]
    %v304 = vld [vmem:[#allocation2 + $0x4] sm:$0xf]
    %v305 = vld [vmem:[#allocation2 + $0x8] sm:$0xf]
    %v306 = vld [vmem:[#allocation2 + $0xc] sm:$0xf]
    %v307 = vld [vmem:[#allocation2 + $0x10] sm:$0xf]
    %v308 = vld [vmem:[#allocation2 + $0x14] sm:$0xf]
    %v309 = vld [vmem:[#allocation2 + $0x18] sm:$0xf]
    %v310 = vld [vmem:[#allocation2 + $0x1c] sm:$0xf]
    %v311 = vld [vmem:[#allocation2 + $0x20] sm:$0xf]
    %v312 = vld [vmem:[#allocation2 + $0x24] sm:$0xf]
    %v313 = vld [vmem:[#allocation2 + $0x28] sm:$0xf]
    %v314 = vld [vmem:[#allocation2 + $0x2c] sm:$0xf]
    %v315 = vld [vmem:[#allocation2 + $0x30] sm:$0xf]
    %v316 = vld [vmem:[#allocation2 + $0x34] sm:$0xf]
    %v317 = vld [vmem:[#allocation2 + $0x38] sm:$0xf]
    %v318 = vld [vmem:[#allocation2 + $0x3c] sm:$0xf]
    %v319 = vld [vmem:[%s4] sm:$0x1]
    %v320 = vpack.c.bf16 %v288, %v287
    %v321 = vpack.c.bf16 %v290, %v289
    %v322 = vpack.c.bf16 %v292, %v291
    %v323 = vpack.c.bf16 %v294, %v293
    %v324 = vpack.c.bf16 %v296, %v295
    %v325 = vpack.c.bf16 %v298, %v297
    %v326 = vpack.c.bf16 %v300, %v299
    %v327 = vpack.c.bf16 %v302, %v301
    %v329 = vlaneseq
    %v330 = vshrl.u32 %v329, 7
    %v331 = vsub.s32 0, %v330
    %v332 = vrot.slane %v319, %v331
    %v350 = vunpack.c.l.b16 %v303
    %v351 = vunpack.c.l.b16 %v304
    %v352 = vunpack.c.l.b16 %v305
    %v353 = vunpack.c.l.b16 %v306
    %v354 = vunpack.c.l.b16 %v307
    %v355 = vunpack.c.l.b16 %v308
    %v356 = vunpack.c.l.b16 %v309
    %v357 = vunpack.c.l.b16 %v310
    %v358 = vunpack.c.l.b16 %v311
    %v359 = vunpack.c.l.b16 %v312
    %v360 = vunpack.c.l.b16 %v313
    %v361 = vunpack.c.l.b16 %v314
    %v362 = vunpack.c.l.b16 %v315
    %v363 = vunpack.c.l.b16 %v316
    %v364 = vunpack.c.l.b16 %v317
    %v365 = vunpack.c.l.b16 %v318
    %v366 = vpack.c.b16 %v351, %v350
    %v367 = vpack.c.b16 %v353, %v352
    %v368 = vpack.c.b16 %v355, %v354
    %v369 = vpack.c.b16 %v357, %v356
    %v370 = vpack.c.b16 %v359, %v358
    %v371 = vpack.c.b16 %v361, %v360
    %v372 = vpack.c.b16 %v363, %v362
    %v373 = vpack.c.b16 %v365, %v364
    %382 = vmatprep.subr.bf16.mxu0 0
    %383 = vmatpush1.bf16.msra.mxu0 %v366
    %384 = vmatprep.subr.bf16.mxu0 0
    %385 = vmatpush1.bf16.msra.mxu0 %v367
    %386 = vmatprep.subr.bf16.mxu0 0
    %387 = vmatpush1.bf16.msra.mxu0 %v368
    %388 = vmatprep.subr.bf16.mxu0 0
    %389 = vmatpush1.bf16.msra.mxu0 %v369
    %390 = vmatprep.subr.bf16.mxu0 0
    %391 = vmatpush1.bf16.msra.mxu0 %v370
    %392 = vmatprep.subr.bf16.mxu0 0
    %393 = vmatpush1.bf16.msra.mxu0 %v371
    %394 = vmatprep.subr.bf16.mxu0 0
    %395 = vmatpush1.bf16.msra.mxu0 %v372
    %396 = vmatprep.subr.bf16.mxu0 0
    %397 = vmatpush1.bf16.msra.mxu0 %v373
    %398 = vmatprep.subr.bf16.mxu0 0
    %399 = vmatpush1.bf16.msra.mxu0 0
    %400 = vmatprep.subr.bf16.mxu0 0
    %401 = vmatpush1.bf16.msra.mxu0 0
    %402 = vmatprep.subr.bf16.mxu0 0
    %403 = vmatpush1.bf16.msra.mxu0 0
    %404 = vmatprep.subr.bf16.mxu0 0
    %405 = vmatpush1.bf16.msra.mxu0 0
    %406 = vmatprep.subr.bf16.mxu0 0
    %407 = vmatpush1.bf16.msra.mxu0 0
    %408 = vmatprep.subr.bf16.mxu0 0
    %409 = vmatpush1.bf16.msra.mxu0 0
    %410 = vmatprep.subr.bf16.mxu0 0
    %411 = vmatpush1.bf16.msra.mxu0 0
    %412 = vmatprep.subr.bf16.mxu0 0
    %413 = vmatpush1.bf16.msra.mxu0 0
    %414 = vmatprep.mubr.bf16.mxu0 0
    %415 = vmatmul.mubr.bf16.gmra.mrb[0].mxu0 %v320
    %v416 = vpop.f32.mrb[0].mxu0
    %v417 = vadd.f32 %v332, %v416
    %v418 = vpop.f32.mrb[0].mxu0
    %v419 = vpop.f32.mrb[0].mxu0
    %v420 = vadd.f32 %v332, %v419
    %v421 = vpop.f32.mrb[0].mxu0
    %422 = vmatprep.mubr.bf16.mxu0 0
    %423 = vmatmul.mubr.bf16.gmra.mrb[0].mxu0 %v321
    %v424 = vpop.f32.mrb[0].mxu0
    %v425 = vadd.f32 %v332, %v424
    %v426 = vpop.f32.mrb[0].mxu0
    %v427 = vpop.f32.mrb[0].mxu0
    %v428 = vadd.f32 %v332, %v427
    %v429 = vpop.f32.mrb[0].mxu0
    %430 = vmatprep.mubr.bf16.mxu0 0
    %431 = vmatmul.mubr.bf16.gmra.mrb[0].mxu0 %v322
    %v432 = vpop.f32.mrb[0].mxu0
    %v433 = vadd.f32 %v332, %v432
    %v434 = vpop.f32.mrb[0].mxu0
    %v435 = vpop.f32.mrb[0].mxu0
    %v436 = vadd.f32 %v332, %v435
    %v437 = vpop.f32.mrb[0].mxu0
    %438 = vmatprep.mubr.bf16.mxu0 0
    %439 = vmatmul.mubr.bf16.gmra.mrb[0].mxu0 %v323
    %v440 = vpop.f32.mrb[0].mxu0
    %v441 = vadd.f32 %v332, %v440
    %v442 = vpop.f32.mrb[0].mxu0
    %v443 = vpop.f32.mrb[0].mxu0
    %v444 = vadd.f32 %v332, %v443
    %v445 = vpop.f32.mrb[0].mxu0
    %446 = vmatprep.mubr.bf16.mxu0 0
    %447 = vmatmul.mubr.bf16.gmra.mrb[0].mxu0 %v324
    %v448 = vpop.f32.mrb[0].mxu0
    %v449 = vadd.f32 %v332, %v448
    %v450 = vpop.f32.mrb[0].mxu0
    %v451 = vpop.f32.mrb[0].mxu0
    %v452 = vadd.f32 %v332, %v451
    %v453 = vpop.f32.mrb[0].mxu0
    %454 = vmatprep.mubr.bf16.mxu0 0
    %455 = vmatmul.mubr.bf16.gmra.mrb[0].mxu0 %v325
    %v456 = vpop.f32.mrb[0].mxu0
    %v457 = vadd.f32 %v332, %v456
    %v458 = vpop.f32.mrb[0].mxu0
    %v459 = vpop.f32.mrb[0].mxu0
    %v460 = vadd.f32 %v332, %v459
    %v461 = vpop.f32.mrb[0].mxu0
    %462 = vmatprep.mubr.bf16.mxu0 0
    %463 = vmatmul.mubr.bf16.gmra.mrb[0].mxu0 %v326
    %v464 = vpop.f32.mrb[0].mxu0
    %v465 = vadd.f32 %v332, %v464
    %v466 = vpop.f32.mrb[0].mxu0
    %v467 = vpop.f32.mrb[0].mxu0
    %v468 = vadd.f32 %v332, %v467
    %v469 = vpop.f32.mrb[0].mxu0
    %470 = vmatprep.mubr.bf16.mxu0 0
    %471 = vmatmul.mubr.bf16.gmra.mrb[0].mxu0 %v327
    %v472 = vpop.f32.mrb[0].mxu0
    %v473 = vadd.f32 %v332, %v472
    %v474 = vpop.f32.mrb[0].mxu0
    %v475 = vpop.f32.mrb[0].mxu0
    %v476 = vadd.f32 %v332, %v475
    %v477 = vpop.f32.mrb[0].mxu0
    %478 = vdwg.mxu0
    %v479 = vmax.f32 %v417, 0.0
    %v480 = vmax.f32 %v420, 0.0
    %v481 = vmax.f32 %v425, 0.0
    %v482 = vmax.f32 %v428, 0.0
    %v483 = vmax.f32 %v433, 0.0
    %v484 = vmax.f32 %v436, 0.0
    %v485 = vmax.f32 %v441, 0.0
    %v486 = vmax.f32 %v444, 0.0
    %v487 = vmax.f32 %v449, 0.0
    %v488 = vmax.f32 %v452, 0.0
    %v489 = vmax.f32 %v457, 0.0
    %v490 = vmax.f32 %v460, 0.0
    %v491 = vmax.f32 %v465, 0.0
    %v492 = vmax.f32 %v468, 0.0
    %v493 = vmax.f32 %v473, 0.0
    %v494 = vmax.f32 %v476, 0.0
    %s495 = scalar_lea.vmem [#allocation2], 64
    %v496 = vld [vmem:[%s495] sm:$0xf]
    %v497 = vld [vmem:[%s495 + $0x4] sm:$0xf]
    %v498 = vld [vmem:[%s495 + $0x8] sm:$0xf]
    %v499 = vld [vmem:[%s495 + $0xc] sm:$0xf]
    %v500 = vld [vmem:[%s495 + $0x10] sm:$0xf]
    %v501 = vld [vmem:[%s495 + $0x14] sm:$0xf]
    %v502 = vld [vmem:[%s495 + $0x18] sm:$0xf]
    %v503 = vld [vmem:[%s495 + $0x1c] sm:$0xf]
    %v504 = vld [vmem:[%s495 + $0x20] sm:$0xf]
    %v505 = vld [vmem:[%s495 + $0x24] sm:$0xf]
    %v506 = vld [vmem:[%s495 + $0x28] sm:$0xf]
    %v507 = vld [vmem:[%s495 + $0x2c] sm:$0xf]
    %v508 = vld [vmem:[%s495 + $0x30] sm:$0xf]
    %v509 = vld [vmem:[%s495 + $0x34] sm:$0xf]
    %v510 = vld [vmem:[%s495 + $0x38] sm:$0xf]
    %v511 = vld [vmem:[%s495 + $0x3c] sm:$0xf]
    %s512 = scalar_lea.vmem %s4, 1
    %v513 = vld [vmem:[%s512] sm:$0x1]
    %v514 = vpack.c.bf16 %v480, %v479
    %v515 = vpack.c.bf16 %v482, %v481
    %v516 = vpack.c.bf16 %v484, %v483
    %v517 = vpack.c.bf16 %v486, %v485
    %v518 = vpack.c.bf16 %v488, %v487
    %v519 = vpack.c.bf16 %v490, %v489
    %v520 = vpack.c.bf16 %v492, %v491
    %v521 = vpack.c.bf16 %v494, %v493
    %v523 = vlaneseq
    %v524 = vshrl.u32 %v523, 7
    %v525 = vsub.s32 0, %v524
    %v526 = vrot.slane %v513, %v525
    %v544 = vunpack.c.l.b16 %v496
    %v545 = vunpack.c.l.b16 %v497
    %v546 = vunpack.c.l.b16 %v498
    %v547 = vunpack.c.l.b16 %v499
    %v548 = vunpack.c.l.b16 %v500
    %v549 = vunpack.c.l.b16 %v501
    %v550 = vunpack.c.l.b16 %v502
    %v551 = vunpack.c.l.b16 %v503
    %v552 = vunpack.c.l.b16 %v504
    %v553 = vunpack.c.l.b16 %v505
    %v554 = vunpack.c.l.b16 %v506
    %v555 = vunpack.c.l.b16 %v507
    %v556 = vunpack.c.l.b16 %v508
    %v557 = vunpack.c.l.b16 %v509
    %v558 = vunpack.c.l.b16 %v510
    %v559 = vunpack.c.l.b16 %v511
    %v560 = vpack.c.b16 %v545, %v544
    %v561 = vpack.c.b16 %v547, %v546
    %v562 = vpack.c.b16 %v549, %v548
    %v563 = vpack.c.b16 %v551, %v550
    %v564 = vpack.c.b16 %v553, %v552
    %v565 = vpack.c.b16 %v555, %v554
    %v566 = vpack.c.b16 %v557, %v556
    %v567 = vpack.c.b16 %v559, %v558
    %576 = vmatprep.subr.bf16.mxu0 0
    %577 = vmatpush1.bf16.msra.mxu0 %v560
    %578 = vmatprep.subr.bf16.mxu0 0
    %579 = vmatpush1.bf16.msra.mxu0 %v561
    %580 = vmatprep.subr.bf16.mxu0 0
    %581 = vmatpush1.bf16.msra.mxu0 %v562
    %582 = vmatprep.subr.bf16.mxu0 0
    %583 = vmatpush1.bf16.msra.mxu0 %v563
    %584 = vmatprep.subr.bf16.mxu0 0
    %585 = vmatpush1.bf16.msra.mxu0 %v564
    %586 = vmatprep.subr.bf16.mxu0 0
    %587 = vmatpush1.bf16.msra.mxu0 %v565
    %588 = vmatprep.subr.bf16.mxu0 0
    %589 = vmatpush1.bf16.msra.mxu0 %v566
    %590 = vmatprep.subr.bf16.mxu0 0
    %591 = vmatpush1.bf16.msra.mxu0 %v567
    %592 = vmatprep.subr.bf16.mxu0 0
    %593 = vmatpush1.bf16.msra.mxu0 0
    %594 = vmatprep.subr.bf16.mxu0 0
    %595 = vmatpush1.bf16.msra.mxu0 0
    %596 = vmatprep.subr.bf16.mxu0 0
    %597 = vmatpush1.bf16.msra.mxu0 0
    %598 = vmatprep.subr.bf16.mxu0 0
    %599 = vmatpush1.bf16.msra.mxu0 0
    %600 = vmatprep.subr.bf16.mxu0 0
    %601 = vmatpush1.bf16.msra.mxu0 0
    %602 = vmatprep.subr.bf16.mxu0 0
    %603 = vmatpush1.bf16.msra.mxu0 0
    %604 = vmatprep.subr.bf16.mxu0 0
    %605 = vmatpush1.bf16.msra.mxu0 0
    %606 = vmatprep.subr.bf16.mxu0 0
    %607 = vmatpush1.bf16.msra.mxu0 0
    %608 = vmatprep.mubr.bf16.mxu0 0
    %609 = vmatmul.mubr.bf16.gmra.mrb[0].mxu0 %v514
    %v610 = vpop.f32.mrb[0].mxu0
    %v611 = vadd.f32 %v526, %v610
    %v612 = vpop.f32.mrb[0].mxu0
    %v613 = vpop.f32.mrb[0].mxu0
    %v614 = vadd.f32 %v526, %v613
    %v615 = vpop.f32.mrb[0].mxu0
    %616 = vmatprep.mubr.bf16.mxu0 0
    %617 = vmatmul.mubr.bf16.gmra.mrb[0].mxu0 %v515
    %v618 = vpop.f32.mrb[0].mxu0
    %v619 = vadd.f32 %v526, %v618
    %v620 = vpop.f32.mrb[0].mxu0
    %v621 = vpop.f32.mrb[0].mxu0
    %v622 = vadd.f32 %v526, %v621
    %v623 = vpop.f32.mrb[0].mxu0
    %624 = vmatprep.mubr.bf16.mxu0 0
    %625 = vmatmul.mubr.bf16.gmra.mrb[0].mxu0 %v516
    %v626 = vpop.f32.mrb[0].mxu0
    %v627 = vadd.f32 %v526, %v626
    %v628 = vpop.f32.mrb[0].mxu0
    %v629 = vpop.f32.mrb[0].mxu0
    %v630 = vadd.f32 %v526, %v629
    %v631 = vpop.f32.mrb[0].mxu0
    %632 = vmatprep.mubr.bf16.mxu0 0
    %633 = vmatmul.mubr.bf16.gmra.mrb[0].mxu0 %v517
    %v634 = vpop.f32.mrb[0].mxu0
    %v635 = vadd.f32 %v526, %v634
    %v636 = vpop.f32.mrb[0].mxu0
    %v637 = vpop.f32.mrb[0].mxu0
    %v638 = vadd.f32 %v526, %v637
    %v639 = vpop.f32.mrb[0].mxu0
    %640 = vmatprep.mubr.bf16.mxu0 0
    %641 = vmatmul.mubr.bf16.gmra.mrb[0].mxu0 %v518
    %v642 = vpop.f32.mrb[0].mxu0
    %v643 = vadd.f32 %v526, %v642
    %v644 = vpop.f32.mrb[0].mxu0
    %v645 = vpop.f32.mrb[0].mxu0
    %v646 = vadd.f32 %v526, %v645
    %v647 = vpop.f32.mrb[0].mxu0
    %648 = vmatprep.mubr.bf16.mxu0 0
    %649 = vmatmul.mubr.bf16.gmra.mrb[0].mxu0 %v519
    %v650 = vpop.f32.mrb[0].mxu0
    %v651 = vadd.f32 %v526, %v650
    %v652 = vpop.f32.mrb[0].mxu0
    %v653 = vpop.f32.mrb[0].mxu0
    %v654 = vadd.f32 %v526, %v653
    %v655 = vpop.f32.mrb[0].mxu0
    %656 = vmatprep.mubr.bf16.mxu0 0
    %657 = vmatmul.mubr.bf16.gmra.mrb[0].mxu0 %v520
    %v658 = vpop.f32.mrb[0].mxu0
    %v659 = vadd.f32 %v526, %v658
    %v660 = vpop.f32.mrb[0].mxu0
    %v661 = vpop.f32.mrb[0].mxu0
    %v662 = vadd.f32 %v526, %v661
    %v663 = vpop.f32.mrb[0].mxu0
    %664 = vmatprep.mubr.bf16.mxu0 0
    %665 = vmatmul.mubr.bf16.gmra.mrb[0].mxu0 %v521
    %v666 = vpop.f32.mrb[0].mxu0
    %v667 = vadd.f32 %v526, %v666
    %v668 = vpop.f32.mrb[0].mxu0
    %v669 = vpop.f32.mrb[0].mxu0
    %v670 = vadd.f32 %v526, %v669
    %v671 = vpop.f32.mrb[0].mxu0
    %672 = vdwg.mxu0
    %v673 = vmax.f32 %v611, 0.0
    %v674 = vmax.f32 %v614, 0.0
    %v675 = vmax.f32 %v619, 0.0
    %v676 = vmax.f32 %v622, 0.0
    %v677 = vmax.f32 %v627, 0.0
    %v678 = vmax.f32 %v630, 0.0
    %v679 = vmax.f32 %v635, 0.0
    %v680 = vmax.f32 %v638, 0.0
    %v681 = vmax.f32 %v643, 0.0
    %v682 = vmax.f32 %v646, 0.0
    %v683 = vmax.f32 %v651, 0.0
    %v684 = vmax.f32 %v654, 0.0
    %v685 = vmax.f32 %v659, 0.0
    %v686 = vmax.f32 %v662, 0.0
    %v687 = vmax.f32 %v667, 0.0
    %v688 = vmax.f32 %v670, 0.0
    %v689 = vpack.c.bf16 %v674, %v673
    %v690 = vpack.c.bf16 %v676, %v675
    %v691 = vpack.c.bf16 %v678, %v677
    %v692 = vpack.c.bf16 %v680, %v679
    %v693 = vpack.c.bf16 %v682, %v681
    %v694 = vpack.c.bf16 %v684, %v683
    %v695 = vpack.c.bf16 %v686, %v685
    %v696 = vpack.c.bf16 %v688, %v687
    %v697 = vld [vmem:[#allocation4] sm:$0xf]
    %v698 = vld [vmem:[#allocation4 + $0x4] sm:$0xf]
    %v699 = vld [vmem:[#allocation4 + $0x8] sm:$0xf]
    %v700 = vld [vmem:[#allocation4 + $0xc] sm:$0xf]
    %v701 = vld [vmem:[#allocation4 + $0x10] sm:$0xf]
    %v702 = vld [vmem:[#allocation4 + $0x14] sm:$0xf]
    %v703 = vld [vmem:[#allocation4 + $0x18] sm:$0xf]
    %v704 = vld [vmem:[#allocation4 + $0x1c] sm:$0xf]
    %v705 = vld [vmem:[#allocation4 + $0x20] sm:$0xf]
    %v706 = vld [vmem:[#allocation4 + $0x24] sm:$0xf]
    %v707 = vld [vmem:[#allocation4 + $0x28] sm:$0xf]
    %v708 = vld [vmem:[#allocation4 + $0x2c] sm:$0xf]
    %v709 = vld [vmem:[#allocation4 + $0x30] sm:$0xf]
    %v710 = vld [vmem:[#allocation4 + $0x34] sm:$0xf]
    %v711 = vld [vmem:[#allocation4 + $0x38] sm:$0xf]
    %v712 = vld [vmem:[#allocation4 + $0x3c] sm:$0xf]
    %v713 = vld [vmem:[%s6] sm:$0x1]
    %v715 = vlaneseq
    %v716 = vshrl.u32 %v715, 7
    %v717 = vsub.s32 0, %v716
    %v718 = vrot.slane %v713, %v717
    %v736 = vunpack.c.l.b16 %v697
    %v737 = vunpack.c.l.b16 %v698
    %v738 = vunpack.c.l.b16 %v699
    %v739 = vunpack.c.l.b16 %v700
    %v740 = vunpack.c.l.b16 %v701
    %v741 = vunpack.c.l.b16 %v702
    %v742 = vunpack.c.l.b16 %v703
    %v743 = vunpack.c.l.b16 %v704
    %v744 = vunpack.c.l.b16 %v705
    %v745 = vunpack.c.l.b16 %v706
    %v746 = vunpack.c.l.b16 %v707
    %v747 = vunpack.c.l.b16 %v708
    %v748 = vunpack.c.l.b16 %v709
    %v749 = vunpack.c.l.b16 %v710
    %v750 = vunpack.c.l.b16 %v711
    %v751 = vunpack.c.l.b16 %v712
    %v752 = vpack.c.b16 %v737, %v736
    %v753 = vpack.c.b16 %v739, %v738
    %v754 = vpack.c.b16 %v741, %v740
    %v755 = vpack.c.b16 %v743, %v742
    %v756 = vpack.c.b16 %v745, %v744
    %v757 = vpack.c.b16 %v747, %v746
    %v758 = vpack.c.b16 %v749, %v748
    %v759 = vpack.c.b16 %v751, %v750
    %768 = vmatprep.subr.bf16.mxu0 0
    %769 = vmatpush1.bf16.msra.mxu0 %v752
    %770 = vmatprep.subr.bf16.mxu0 0
    %771 = vmatpush1.bf16.msra.mxu0 %v753
    %772 = vmatprep.subr.bf16.mxu0 0
    %773 = vmatpush1.bf16.msra.mxu0 %v754
    %774 = vmatprep.subr.bf16.mxu0 0
    %775 = vmatpush1.bf16.msra.mxu0 %v755
    %776 = vmatprep.subr.bf16.mxu0 0
    %777 = vmatpush1.bf16.msra.mxu0 %v756
    %778 = vmatprep.subr.bf16.mxu0 0
    %779 = vmatpush1.bf16.msra.mxu0 %v757
    %780 = vmatprep.subr.bf16.mxu0 0
    %781 = vmatpush1.bf16.msra.mxu0 %v758
    %782 = vmatprep.subr.bf16.mxu0 0
    %783 = vmatpush1.bf16.msra.mxu0 %v759
    %784 = vmatprep.subr.bf16.mxu0 0
    %785 = vmatpush1.bf16.msra.mxu0 0
    %786 = vmatprep.subr.bf16.mxu0 0
    %787 = vmatpush1.bf16.msra.mxu0 0
    %788 = vmatprep.subr.bf16.mxu0 0
    %789 = vmatpush1.bf16.msra.mxu0 0
    %790 = vmatprep.subr.bf16.mxu0 0
    %791 = vmatpush1.bf16.msra.mxu0 0
    %792 = vmatprep.subr.bf16.mxu0 0
    %793 = vmatpush1.bf16.msra.mxu0 0
    %794 = vmatprep.subr.bf16.mxu0 0
    %795 = vmatpush1.bf16.msra.mxu0 0
    %796 = vmatprep.subr.bf16.mxu0 0
    %797 = vmatpush1.bf16.msra.mxu0 0
    %798 = vmatprep.subr.bf16.mxu0 0
    %799 = vmatpush1.bf16.msra.mxu0 0
    %800 = vmatprep.mubr.bf16.mxu0 0
    %801 = vmatmul.mubr.bf16.gmra.mrb[0].mxu0 %v689
    %v802 = vpop.f32.mrb[0].mxu0
    %v803 = vadd.f32 %v718, %v802
    %v804 = vpop.f32.mrb[0].mxu0
    %v805 = vpop.f32.mrb[0].mxu0
    %v806 = vadd.f32 %v718, %v805
    %v807 = vpop.f32.mrb[0].mxu0
    %808 = vmatprep.mubr.bf16.mxu0 0
    %809 = vmatmul.mubr.bf16.gmra.mrb[0].mxu0 %v690
    %v810 = vpop.f32.mrb[0].mxu0
    %v811 = vadd.f32 %v718, %v810
    %v812 = vpop.f32.mrb[0].mxu0
    %v813 = vpop.f32.mrb[0].mxu0
    %v814 = vadd.f32 %v718, %v813
    %v815 = vpop.f32.mrb[0].mxu0
    %816 = vmatprep.mubr.bf16.mxu0 0
    %817 = vmatmul.mubr.bf16.gmra.mrb[0].mxu0 %v691
    %v818 = vpop.f32.mrb[0].mxu0
    %v819 = vadd.f32 %v718, %v818
    %v820 = vpop.f32.mrb[0].mxu0
    %v821 = vpop.f32.mrb[0].mxu0
    %v822 = vadd.f32 %v718, %v821
    %v823 = vpop.f32.mrb[0].mxu0
    %824 = vmatprep.mubr.bf16.mxu0 0
    %825 = vmatmul.mubr.bf16.gmra.mrb[0].mxu0 %v692
    %v826 = vpop.f32.mrb[0].mxu0
    %v827 = vadd.f32 %v718, %v826
    %v828 = vpop.f32.mrb[0].mxu0
    %v829 = vpop.f32.mrb[0].mxu0
    %v830 = vadd.f32 %v718, %v829
    %v831 = vpop.f32.mrb[0].mxu0
    %832 = vmatprep.mubr.bf16.mxu0 0
    %833 = vmatmul.mubr.bf16.gmra.mrb[0].mxu0 %v693
    %v834 = vpop.f32.mrb[0].mxu0
    %v835 = vadd.f32 %v718, %v834
    %v836 = vpop.f32.mrb[0].mxu0
    %v837 = vpop.f32.mrb[0].mxu0
    %v838 = vadd.f32 %v718, %v837
    %v839 = vpop.f32.mrb[0].mxu0
    %840 = vmatprep.mubr.bf16.mxu0 0
    %841 = vmatmul.mubr.bf16.gmra.mrb[0].mxu0 %v694
    %v842 = vpop.f32.mrb[0].mxu0
    %v843 = vadd.f32 %v718, %v842
    %v844 = vpop.f32.mrb[0].mxu0
    %v845 = vpop.f32.mrb[0].mxu0
    %v846 = vadd.f32 %v718, %v845
    %v847 = vpop.f32.mrb[0].mxu0
    %848 = vmatprep.mubr.bf16.mxu0 0
    %849 = vmatmul.mubr.bf16.gmra.mrb[0].mxu0 %v695
    %v850 = vpop.f32.mrb[0].mxu0
    %v851 = vadd.f32 %v718, %v850
    %v852 = vpop.f32.mrb[0].mxu0
    %v853 = vpop.f32.mrb[0].mxu0
    %v854 = vadd.f32 %v718, %v853
    %v855 = vpop.f32.mrb[0].mxu0
    %856 = vmatprep.mubr.bf16.mxu0 0
    %857 = vmatmul.mubr.bf16.gmra.mrb[0].mxu0 %v696
    %v858 = vpop.f32.mrb[0].mxu0
    %v859 = vadd.f32 %v718, %v858
    %v860 = vpop.f32.mrb[0].mxu0
    %v861 = vpop.f32.mrb[0].mxu0
    %v862 = vadd.f32 %v718, %v861
    %v863 = vpop.f32.mrb[0].mxu0
    %864 = vdwg.mxu0
    %865 = vst [vmem:[%s7] sm:$0xff] %v803
    %866 = vst [vmem:[%s7 + $0x8] sm:$0xff] %v806
    %867 = vst [vmem:[%s7 + $0x10] sm:$0xff] %v811
    %868 = vst [vmem:[%s7 + $0x18] sm:$0xff] %v814
    %869 = vst [vmem:[%s7 + $0x20] sm:$0xff] %v819
    %870 = vst [vmem:[%s7 + $0x28] sm:$0xff] %v822
    %871 = vst [vmem:[%s7 + $0x30] sm:$0xff] %v827
    %872 = vst [vmem:[%s7 + $0x38] sm:$0xff] %v830
    %873 = vst [vmem:[%s7 + $0x40] sm:$0xff] %v835
    %874 = vst [vmem:[%s7 + $0x48] sm:$0xff] %v838
    %875 = vst [vmem:[%s7 + $0x50] sm:$0xff] %v843
    %876 = vst [vmem:[%s7 + $0x58] sm:$0xff] %v846
    %877 = vst [vmem:[%s7 + $0x60] sm:$0xff] %v851
    %878 = vst [vmem:[%s7 + $0x68] sm:$0xff] %v854
    %879 = vst [vmem:[%s7 + $0x70] sm:$0xff] %v859
    %880 = vst [vmem:[%s7 + $0x78] sm:$0xff] %v862
    // Predicated region
    $region38: #{asl_network_forward.1} parent=1 // pred_check
      _
    $region39: #{asl_network_forward.1} parent=1 // pred_check_branch
      %882 = sbr.rel (0) target = $region41
    $region40: #{asl_network_forward.1} parent=1 // pred_region
      _
    $region41: #{asl_network_forward.1} parent=1 // pred_fallthru
      _
    // Predicated region
    $region42: #{asl_network_forward.1} parent=1 // pred_check
      _
    $region43: #{asl_network_forward.1} parent=1 // pred_check_branch
      %884 = sbr.rel (0) target = $region45
    $region44: #{asl_network_forward.1} parent=1 // pred_region
      _
    $region45: #{asl_network_forward.1} parent=1 // pred_fallthru
      _
    %885 = vsyncpa [#allocation3], 1
    %886 = vsyncpa [#allocation5], 1

</llo_original>
